<compile_context>
chip_gen: v7x
topology: tpu7x:2x2x1
jax: 0.10.0
libtpu: 0.0.40
codegen_flags: <defaults>
</compile_context>

<pallas_src>
import math

import jax
import jax.numpy as jnp
from jax import lax
from jax.experimental import pallas as pl
from jax.experimental.pallas import tpu as pltpu

_LANE = 128
_MAX_OUT_BLOCK_BYTES = 8 * 1024 * 1024   # per-step output block (double-buffered)
_VMEM_LIMIT_BYTES = 48 * 1024 * 1024     # safe on v7x (64 MiB) and v5e/v6e (128 MiB)


def _round_up(a: int, b: int) -> int:
    return ((a + b - 1) // b) * b


def _make_kernel(start: float, step: float, coeff: float, K: int, G: int):
    start = float(start)
    step = float(step)
    coeff = float(coeff)
    lane_w = G * K

    def kernel(x_ref, o_ref):
        # x_ref: (tile_rows, G) f32      o_ref: (tile_rows, G*K)
        x = x_ref[...]                                               # (T, G)

        # Constant 0/1 selector: sel[g, l] = 1 iff l in [g*K, (g+1)*K).
        li = lax.broadcasted_iota(jnp.int32, (G, lane_w), 1)
        gi = lax.broadcasted_iota(jnp.int32, (G, lane_w), 0)
        sel = jnp.logical_and(li >= gi * K, li < gi * K + K).astype(jnp.float32)

        # Expand x across lanes on the (idle) MXU: xe[r, g*K+k] = x[r, g].
        xe = jnp.dot(x, sel, preferred_element_type=jnp.float32)    # (T, G*K)

        # Constant offset row: off[l] = start + step * (l % K).
        kf = (lax.broadcasted_iota(jnp.int32, (1, lane_w), 1) % K).astype(jnp.float32)
        off = start + step * kf                                     # (1, G*K)

        d = xe - off
        o_ref[...] = jnp.exp(coeff * (d * d)).astype(o_ref.dtype)

    return kernel


def gaussian_expansion(x, max_value: float, K: int, start: float = 0.0,
                       out_dtype=jnp.float32):
    """Pallas implementation of GaussianExpansion.forward.

    x: arbitrary-shaped float array; returns array of shape (*x.shape, K).
    """
    if K < 2:
        raise ValueError("GaussianExpansion requires K >= 2 (offsets[1] is used).")

    orig_shape = x.shape
    x_flat = jnp.reshape(x, (-1,)).astype(jnp.float32)
    n = x_flat.shape[0]
    if n == 0:
        return jnp.zeros((*orig_shape, K), dtype=out_dtype)

    # Scalar "parameters" (match linspace / equal widths of the module).
    step = (float(max_value) - float(start)) / (K - 1)
    width = abs(step)
    coeff = -0.5 / (width * width)

    # Output row layout: G consecutive x values per row, K gaussians each ->
    # lane width G*K is a multiple of 128 and matches row-major (n, K) order.
    G = _LANE // math.gcd(K, _LANE)
    lane_w = G * K
    out_item = jnp.dtype(out_dtype).itemsize
    row_bytes = lane_w * out_item

    # Tile rows so one output block is ~8 MiB (double-buffered).
    max_tile_rows = max(8, (_MAX_OUT_BLOCK_BYTES // row_bytes) // 8 * 8)
    R_needed = -(-n // G)                                 # cdiv
    num_tiles = -(-R_needed // max_tile_rows)             # cdiv
    if num_tiles < 2 and R_needed >= 16:
        num_tiles = 2                                     # use both v7x TensorCores
    tile_rows = _round_up(-(-R_needed // num_tiles), 8)
    R_pad = tile_rows * num_tiles
    n_pad = R_pad * G

    if n_pad != n:
        x_flat = jnp.pad(x_flat, (0, n_pad - n))
    x_rows = x_flat.reshape(R_pad, G)

    out = pl.pallas_call(
        _make_kernel(start, step, coeff, K, G),
        out_shape=jax.ShapeDtypeStruct((R_pad, lane_w), out_dtype),
        grid_spec=pltpu.PrefetchScalarGridSpec(
            num_scalar_prefetch=0,
            grid=(num_tiles,),
            in_specs=[pl.BlockSpec((tile_rows, G), lambda i: (i, 0))],
            out_specs=pl.BlockSpec((tile_rows, lane_w), lambda i: (i, 0)),
        ),
        compiler_params=pltpu.CompilerParams(
            dimension_semantics=("parallel",),
            vmem_limit_bytes=_VMEM_LIMIT_BYTES,
        ),
    )(x_rows)

    # Free reshape: kernel output is already in flat row-major (n, K) order.
    out2d = out.reshape(n_pad, K)
    if n_pad != n:
        out2d = out2d[:n]          # contiguous leading-dim slice (pad only)
    return out2d.reshape(*orig_shape, K)


def _reference(x, max_value, K, start=0.0):
    offsets = jnp.linspace(start, max_value, K, dtype=jnp.float32)
    width = jnp.abs(offsets[1] - offsets[0])
    widths = width * jnp.ones_like(offsets)
    coeff = -0.5 / widths ** 2
    diff = x[..., None].astype(jnp.float32) - offsets
    return jnp.exp(coeff * diff ** 2)


if __name__ == "__main__":
    key = jax.random.PRNGKey(0)
    max_value = 5.0
    K = 16

    # Case 1: size divisible by the G=8 row width (no padding path).
    x1 = jax.random.uniform(key, (4, 32), dtype=jnp.float32, maxval=5.0)
    out1 = jax.block_until_ready(gaussian_expansion(x1, max_value=max_value, K=K))
    ref1 = _reference(x1, max_value, K)
    assert out1.shape == (4, 32, K), out1.shape
    assert jnp.allclose(out1, ref1, atol=1e-5, rtol=1e-5), float(
        jnp.max(jnp.abs(out1 - ref1)))

    # Case 2: awkward size (exercises padding + trailing slice path).
    x2 = jax.random.uniform(jax.random.PRNGKey(1), (3, 5, 7),
                            dtype=jnp.float32, maxval=5.0)
    out2 = jax.block_until_ready(gaussian_expansion(x2, max_value=max_value, K=K))
    ref2 = _reference(x2, max_value, K)
    assert out2.shape == (3, 5, 7, K), out2.shape
    assert jnp.allclose(out2, ref2, atol=1e-5, rtol=1e-5), float(
        jnp.max(jnp.abs(out2 - ref2)))

    print("KERNEL_OK")
</pallas_src>

<mosaic_0001>
module attributes {stable_mosaic.version = 11 : i64} {
  func.func @kernel(%arg0: i32, %arg1: memref<8x8xf32, #tpu.memory_space<vmem>>, %arg2: memref<8x128xf32, #tpu.memory_space<vmem>>) attributes {dimension_semantics = [#tpu.dimension_semantics<parallel>], iteration_bounds = array<i64: 2>, scalar_prefetch = 0 : i64, scratch_operands = 0 : i64, tpu.core_type = #tpu.core_type<tc>, window_params = [{transform_indices = @transform_0, window_bounds = array<i64: 8, 8>}, {transform_indices = @transform_1, window_bounds = array<i64: 8, 128>}]} {
    %c0 = arith.constant 0 : index
    %c0_0 = arith.constant 0 : index
    %0 = vector.load %arg1[%c0, %c0_0] : memref<8x8xf32, #tpu.memory_space<vmem>>, vector<8x8xf32>
    %1 = tpu.iota {dimensions = array<i32: 1>} : vector<8x128xi32>
    %2 = tpu.iota {dimensions = array<i32: 0>} : vector<8x128xi32>
    %c16_i32 = arith.constant 16 : i32
    %3 = vector.broadcast %c16_i32 : i32 to vector<8x128xi32>
    %4 = arith.muli %2, %3 : vector<8x128xi32>
    %5 = arith.cmpi sge, %1, %4 : vector<8x128xi32>
    %c16_i32_1 = arith.constant 16 : i32
    %6 = vector.broadcast %c16_i32_1 : i32 to vector<8x128xi32>
    %7 = arith.muli %2, %6 : vector<8x128xi32>
    %c16_i32_2 = arith.constant 16 : i32
    %8 = vector.broadcast %c16_i32_2 : i32 to vector<8x128xi32>
    %9 = arith.addi %7, %8 : vector<8x128xi32>
    %10 = arith.cmpi slt, %1, %9 : vector<8x128xi32>
    %11 = arith.andi %5, %10 : vector<8x128xi1>
    %12 = arith.extui %11 : vector<8x128xi1> to vector<8x128xi32>
    %13 = arith.sitofp %12 : vector<8x128xi32> to vector<8x128xf32>
    %cst = arith.constant dense<0.000000e+00> : vector<8x128xf32>
    %14 = tpu.matmul %0, %13, %cst {dimension_numbers = #tpu.dot_dimension_numbers<[1], [0], [0], [1], [0, 0, 1, 1], [], []>} : vector<8x8xf32>, vector<8x128xf32>, vector<8x128xf32> -> vector<8x128xf32>
    %15 = tpu.iota {dimensions = array<i32: 1>} : vector<1x128xi32>
    %c16_i32_3 = arith.constant 16 : i32
    %c0_i32 = arith.constant 0 : i32
    %16 = arith.cmpi eq, %c16_i32_3, %c0_i32 : i32
    %c1_i32 = arith.constant 1 : i32
    %17 = arith.select %16, %c1_i32, %c16_i32_3 : i32
    %18 = vector.broadcast %17 : i32 to vector<1x128xi32>
    %19 = arith.remsi %15, %18 : vector<1x128xi32>
    %c0_i32_4 = arith.constant 0 : i32
    %20 = vector.broadcast %c0_i32_4 : i32 to vector<1x128xi32>
    %21 = arith.cmpi ne, %19, %20 : vector<1x128xi32>
    %c0_i32_5 = arith.constant 0 : i32
    %22 = vector.broadcast %c0_i32_5 : i32 to vector<1x128xi32>
    %23 = arith.cmpi slt, %19, %22 : vector<1x128xi32>
    %c0_i32_6 = arith.constant 0 : i32
    %24 = arith.cmpi slt, %17, %c0_i32_6 : i32
    %25 = vector.broadcast %24 : i1 to vector<1x128xi1>
    %26 = vector.broadcast %25 : vector<1x128xi1> to vector<1x128xi1>
    %27 = arith.xori %23, %26 : vector<1x128xi1>
    %28 = arith.andi %27, %21 : vector<1x128xi1>
    %29 = vector.broadcast %17 : i32 to vector<1x128xi32>
    %30 = arith.addi %19, %29 : vector<1x128xi32>
    %31 = arith.select %28, %30, %19 : vector<1x128xi1>, vector<1x128xi32>
    %32 = arith.sitofp %31 : vector<1x128xi32> to vector<1x128xf32>
    %cst_7 = arith.constant 0.333333343 : f32
    %33 = vector.broadcast %cst_7 : f32 to vector<1x128xf32>
    %34 = arith.mulf %33, %32 : vector<1x128xf32>
    %cst_8 = arith.constant 0.000000e+00 : f32
    %35 = vector.broadcast %cst_8 : f32 to vector<1x128xf32>
    %36 = arith.addf %35, %34 : vector<1x128xf32>
    %37 = vector.broadcast %36 : vector<1x128xf32> to vector<8x128xf32>
    %38 = arith.subf %14, %37 : vector<8x128xf32>
    %39 = arith.mulf %38, %38 : vector<8x128xf32>
    %cst_9 = arith.constant -4.500000e+00 : f32
    %40 = vector.broadcast %cst_9 : f32 to vector<8x128xf32>
    %41 = arith.mulf %40, %39 : vector<8x128xf32>
    %42 = math.exp %41 : vector<8x128xf32>
    %c0_10 = arith.constant 0 : index
    %c0_11 = arith.constant 0 : index
    %43 = vector.load %arg2[%c0_10, %c0_11] : memref<8x128xf32, #tpu.memory_space<vmem>>, vector<8x128xf32>
    tpu.vector_store %arg2[%c0_10, %c0_11], %42 {strides = array<i32>} : memref<8x128xf32, #tpu.memory_space<vmem>>, vector<8x128xf32>,
    return
  }
  func.func @transform_0(%arg0: i32) -> (i32, i32) {
    %c0_i32 = arith.constant 0 : i32
    %c0_i32_0 = arith.constant 0 : i32
    return %arg0, %c0_i32 : i32, i32
  }
  func.func @transform_1(%arg0: i32) -> (i32, i32) {
    %c0_i32 = arith.constant 0 : i32
    %c0_i32_0 = arith.constant 0 : i32
    return %arg0, %c0_i32 : i32, i32
  }
}

</mosaic_0001>

<llo_original>
// kernel: tpu_custom_call.1
$region0: #{tpu_custom_call.1}
  #allocation0 [shape = 'u32[]', space=smem, size = 0x4, offset = 0x4, fixed_abs, tag = 'smem constant byte address 0x4 - core index']
  #allocation1 [shape = 'u32[144,128]{1,0:T(1,128)}', space=vmem, size = 0x12000, scoped, tag = 'internal scratch']
  %s0 = inlined_call_operand.vmem [shape: f32[16,8], index: 0, kind: input, shape index: {}]
  %s1 = inlined_call_operand.hbm [shape: f32[16,128], index: 1, kind: output, shape index: {}]
  %s2 = sld [smem:[#allocation0]]
  $region37: #{tpu_custom_call.1} parent=0
    _
  %s4 = ssub.s32 1, %s2
  %s5 = scalar_select 0, %s4, %s2
  $region1: #{tpu_custom_call.1} parent=0
    #allocation2 [shape = 'u8[8192]{0}', space=vmem, size = 0x2000, scoped, tag = 'output window, operand 0']
    #allocation3 [shape = 's32[2]{0}', space=sflag, size = 0x8, scoped, tag = 'scoped memory for tpu_custom_call.1']
    %6 = vsyncpa [#allocation3], 0
    %s7 = scalar_lea.sflag [#allocation3], 1
    %8 = vsyncpa %s7, 0
    loop: start=0, step=1, limit=4
    $region2: #{tpu_custom_call.1} parent=1 // loop_pre_header
      _
    $region3: #{tpu_custom_call.1} parent=1 // loop_header
      %s10 = sphi 0, %s14
      %p11 = scmp.ge.s32.totalorder %s10, 4
      %s20 = sphi 0, %s22
      %s23 = sphi 0, %s20
      %s24 = sphi 0, %s23
      %s40 = sphi 0, %s24
      %s46 = sphi 0, %s48
      %s49 = sphi 0, %s46
      %s50 = sphi 0, %s49
      %s66 = sphi 0, %s50
    $region4: #{tpu_custom_call.1} parent=1 // loop_header_branch
      %13 = sbr.rel (%p11) target = $region8
    $region5: #{tpu_custom_call.1} parent=1 // loop_body
      %s15 = ssub.s32 %s10, 1
      %s16 = ssub.s32 %s10, 2
      %s17 = sadd.s32 %s10, 1
      %s18 = ssub.s32 %s10, %s17
      %p19 = scmp.eq.s32.totalorder %s18, 0
      %s21 = sadd.s32 %s20, 1
      %s22 = scalar_select %p19, %s20, %s21
      %p25 = pneg %p19
      %p26 = scmp.eq.s32.totalorder %s10, 1
      %p27 = por %p25, %p26
      %p28 = scmp.ne.s32.totalorder %s20, %s23
      %p29 = scmp.eq.s32.totalorder %s10, 0
      %p30 = por %p28, %p29
      %p31 = scmp.ne.s32.totalorder %s20, %s23
      %p32 = scmp.eq.s32.totalorder %s15, 1
      %p33 = por %p31, %p32
      %p34 = scmp.ne.s32.totalorder %s23, %s24
      %p35 = scmp.eq.s32.totalorder %s15, 0
      %p36 = por %p34, %p35
      %p37 = scmp.ne.s32.totalorder %s23, %s24
      %p38 = scmp.eq.s32.totalorder %s16, 1
      %p39 = por %p37, %p38
      %p41 = scmp.ne.s32.totalorder %s24, %s40
      %p42 = scmp.eq.s32.totalorder %s16, 0
      %p43 = por %p41, %p42
      %s44 = ssub.s32 %s10, %s17
      %p45 = scmp.eq.s32.totalorder %s44, 0
      %s47 = sadd.s32 %s46, 1
      %s48 = scalar_select %p45, %s46, %s47
      %p51 = pneg %p45
      %p52 = scmp.eq.s32.totalorder %s10, 1
      %p53 = por %p51, %p52
      %p54 = scmp.ne.s32.totalorder %s46, %s49
      %p55 = scmp.eq.s32.totalorder %s10, 0
      %p56 = por %p54, %p55
      %p57 = scmp.ne.s32.totalorder %s46, %s49
      %p58 = scmp.eq.s32.totalorder %s15, 1
      %p59 = por %p57, %p58
      %p60 = scmp.ne.s32.totalorder %s49, %s50
      %p61 = scmp.eq.s32.totalorder %s15, 0
      %p62 = por %p60, %p61
      %p63 = scmp.ne.s32.totalorder %s49, %s50
      %p64 = scmp.eq.s32.totalorder %s16, 1
      %p65 = por %p63, %p64
      %p67 = scmp.ne.s32.totalorder %s50, %s66
      %p68 = scmp.eq.s32.totalorder %s16, 0
      %p69 = por %p67, %p68
      %p70 = scmp.le.s32.totalorder 1, %s10
      %p71 = scmp.lt.s32.totalorder %s10, 3
      %p72 = pnand %p70, %p71
      %p73 = pneg %p72
      // Predicated region
      $region9: #{tpu_custom_call.1} parent=5 // pred_check
        _
      $region10: #{tpu_custom_call.1} parent=5 // pred_check_branch
        %75 = sbr.rel (%p72) target = $region12
      $region11: #{tpu_custom_call.1} parent=5 // pred_region
        %s76 = ssub.s32 %s10, 1
      $region12: #{tpu_custom_call.1} parent=5 // pred_fallthru
        _
      %p77 = scmp.lt.s32.totalorder %s10, 2
      // Predicated region
      $region13: #{tpu_custom_call.1} parent=5 // pred_check
        %p78 = pneg %p77
      $region14: #{tpu_custom_call.1} parent=5 // pred_check_branch
        %80 = sbr.rel (%p78) target = $region16
      $region15: #{tpu_custom_call.1} parent=5 // pred_region
        // Predicated region
        $region17: #{tpu_custom_call.1} parent=15 // pred_check
          %p81 = pneg %p30
        $region18: #{tpu_custom_call.1} parent=15 // pred_check_branch
          %83 = sbr.rel (%p81) target = $region20
        $region19: #{tpu_custom_call.1} parent=15 // pred_region
          %p84 = scmp.lt.s32.totalorder %s10, 1
          %s85 = scalar_select %p84, %s10, 1
          %s86 = smul.addr %s85, 8
          %s87 = scalar_lea.vmem %s0, %s86
        $region20: #{tpu_custom_call.1} parent=15 // pred_fallthru
          _
      $region16: #{tpu_custom_call.1} parent=5 // pred_fallthru
        _
      %p88 = scmp.le.s32.totalorder 1, %s10
      %p89 = scmp.lt.s32.totalorder %s10, 3
      %p90 = pnand %p88, %p89
      %p91 = pneg %p90
      // Predicated region
      $region21: #{tpu_custom_call.1} parent=5 // pred_check
        _
      $region22: #{tpu_custom_call.1} parent=5 // pred_check_branch
        %93 = sbr.rel (%p90) target = $region24
      $region23: #{tpu_custom_call.1} parent=5 // pred_region
        %s94 = ssub.s32 %s10, 1
        %p95 = scmp.lt.s32.totalorder %s15, 1
        %s96 = scalar_select %p95, %s15, 1
        %s97 = smul.addr %s96, 8
        %s98 = scalar_lea.vmem %s0, %s97
        %p99 = pneg %p36
        %p100 = pneg %p33
        %p101 = pneg %p62
        %p102 = pneg %p59
        %s103 = sand.u32 %s49, 1
        %s104 = scalar_lea.sflag [#allocation3], %s103
        %s105 = sand.u32 %s49, 1
        %s106 = smul.addr %s105, 8
        %s107 = scalar_lea.vmem [#allocation2], %s106
        %p108 = scmp.lt.s32.totalorder %s15, 1
        %s109 = scalar_select %p108, %s15, 1
        %s110 = smul.addr %s109, 8
        %s111 = scalar_lea.vmem %s0, %s110
        %v112 = vld [vmem:[%s111] sm:$0xff]
        %v113 = vlaneseq
        %v114 = vand.u32 %v113, 127
        %v115 = vlaneseq
        %v116 = vshrl.u32 %v115, 7
        %v117 = vmul.u32 %v116, 16
        %vm118 = vcmp.ge.s32.totalorder %v114, %v117
        %v119 = vadd.s32 %v117, 16
        %vm120 = vcmp.lt.s32.totalorder %v114, %v119
        %vm121 = vmand %vm118, %vm120
        %v122 = vsel %vm121, 1, 0
        %v123 = vcvt.s32.f32 %v122
        %vm124 = vcmask 64512
        %v126 = vsel %vm124, %v112, 0
        %128 = vmatprep.subr.mxu0 0.0
        %129 = vmatpush1.msra.mxu0 %v123
        %130 = vmatprep.subr.mxu0 0.0
        %131 = vmatpush1.msra.mxu0 0.0
        %132 = vmatprep.subr.mxu0 0.0
        %133 = vmatpush1.msra.mxu0 0.0
        %134 = vmatprep.subr.mxu0 0.0
        %135 = vmatpush1.msra.mxu0 0.0
        %136 = vmatprep.subr.mxu0 0.0
        %137 = vmatpush1.msra.mxu0 0.0
        %138 = vmatprep.subr.mxu0 0.0
        %139 = vmatpush1.msra.mxu0 0.0
        %140 = vmatprep.subr.mxu0 0.0
        %141 = vmatpush1.msra.mxu0 0.0
        %142 = vmatprep.subr.mxu0 0.0
        %143 = vmatpush1.msra.mxu0 0.0
        %144 = vmatprep.subr.mxu0 0.0
        %145 = vmatpush1.msra.mxu0 0.0
        %146 = vmatprep.subr.mxu0 0.0
        %147 = vmatpush1.msra.mxu0 0.0
        %148 = vmatprep.subr.mxu0 0.0
        %149 = vmatpush1.msra.mxu0 0.0
        %150 = vmatprep.subr.mxu0 0.0
        %151 = vmatpush1.msra.mxu0 0.0
        %152 = vmatprep.subr.mxu0 0.0
        %153 = vmatpush1.msra.mxu0 0.0
        %154 = vmatprep.subr.mxu0 0.0
        %155 = vmatpush1.msra.mxu0 0.0
        %156 = vmatprep.subr.mxu0 0.0
        %157 = vmatpush1.msra.mxu0 0.0
        %158 = vmatprep.subr.mxu0 0.0
        %159 = vmatpush1.msra.mxu0 0.0
        %160 = vmatprep.subr.mxu0 0.0
        %161 = vmatpush1.msra.mxu0 0.0
        %162 = vmatprep.subr.mxu0 0.0
        %163 = vmatpush1.msra.mxu0 0.0
        %164 = vmatprep.subr.mxu0 0.0
        %165 = vmatpush1.msra.mxu0 0.0
        %166 = vmatprep.subr.mxu0 0.0
        %167 = vmatpush1.msra.mxu0 0.0
        %168 = vmatprep.subr.mxu0 0.0
        %169 = vmatpush1.msra.mxu0 0.0
        %170 = vmatprep.subr.mxu0 0.0
        %171 = vmatpush1.msra.mxu0 0.0
        %172 = vmatprep.subr.mxu0 0.0
        %173 = vmatpush1.msra.mxu0 0.0
        %174 = vmatprep.subr.mxu0 0.0
        %175 = vmatpush1.msra.mxu0 0.0
        %176 = vmatprep.subr.mxu0 0.0
        %177 = vmatpush1.msra.mxu0 0.0
        %178 = vmatprep.subr.mxu0 0.0
        %179 = vmatpush1.msra.mxu0 0.0
        %180 = vmatprep.subr.mxu0 0.0
        %181 = vmatpush1.msra.mxu0 0.0
        %182 = vmatprep.subr.mxu0 0.0
        %183 = vmatpush1.msra.mxu0 0.0
        %184 = vmatprep.subr.mxu0 0.0
        %185 = vmatpush1.msra.mxu0 0.0
        %186 = vmatprep.subr.mxu0 0.0
        %187 = vmatpush1.msra.mxu0 0.0
        %188 = vmatprep.subr.mxu0 0.0
        %189 = vmatpush1.msra.mxu0 0.0
        %190 = vmatprep.subr.mxu0 0.0
        %191 = vmatpush1.msra.mxu0 0.0
        %192 = vmatprep.mubr.f32.mxu0 0.0
        %193 = vmatmul.mubr.f32.gmra.mrb[0].mxu0 %v126
        %v194 = vpop.f32.mrb[0].mxu0
        %v195 = vadd.f32 0.0, %v194
        %v196 = vpop.f32.mrb[0].mxu0
        %197 = vdwg.mxu0
        %vm198 = vcmp.lt.s32.totalorder %v114, 0
        %v199 = vsub.s32 0, %v114
        %v200 = vsel %vm198, %v199, %v114
        %v201 = vshrl.u32 %v200, 4
        %v202 = vand.u32 %v200, 15
        %v203 = vsub.s32 0, %v202
        %v204 = vsel %vm198, %v203, %v202
        %vm205 = vcmp.ne.s32.totalorder %v204, 0
        %vm206 = vcmp.lt.s32.totalorder %v204, 0
        %vm207 = vmand %vm206, %vm205
        %v208 = vadd.s32 %v204, 16
        %v209 = vsel %vm207, %v208, %v204
        %v210 = vcvt.s32.f32 %v209
        %v211 = vmul.f32 %v210, 0.33333334
        %v212 = vadd.f32 %v211, 0.0
        %v213 = vsub.f32 %v195, %v212
        %v214 = vmul.f32 %v213, %v213
        %v215 = vmul.f32 %v214, -4.5
        %v216 = vmul.f32 %v215, 1.442695
        %v217 = vpow.pop %v216
        %218 = vst [vmem:[%s107] sm:$0xff] %v217
        %s219 = sand.u32 %s49, 1
        %s220 = scalar_lea.sflag [#allocation3], %s219
        %s221 = sand.u32 %s49, 1
        %s222 = smul.addr %s221, 8
        %s223 = scalar_lea.vmem [#allocation2], %s222
        // Predicated region
        $region25: #{tpu_custom_call.1} parent=23 // pred_check
          %p224 = pneg %p59
        $region26: #{tpu_custom_call.1} parent=23 // pred_check_branch
          %226 = sbr.rel (%p224) target = $region28
        $region27: #{tpu_custom_call.1} parent=23 // pred_region
          %s228 = ssub.s32 128, 128
          %229 = vsyncadd %s220, %s228
          %s230 = smul.addr %s15, 128
          %s231 = scalar_lea.hbm %s1, %s230
          %s233 = sshll.u32 %s223, 4
          %s234 = int_to_ptr.vmem [resolvable:$true] %s233
          %236 = dma.vmem_to_hbm [thread:$0]  %s234, 128, %s231, %s220
        $region28: #{tpu_custom_call.1} parent=23 // pred_fallthru
          _
      $region24: #{tpu_custom_call.1} parent=5 // pred_fallthru
        _
      %p237 = scmp.le.s32.totalorder 2, %s10
      // Predicated region
      $region29: #{tpu_custom_call.1} parent=5 // pred_check
        %p238 = pneg %p237
      $region30: #{tpu_custom_call.1} parent=5 // pred_check_branch
        %240 = sbr.rel (%p238) target = $region32
      $region31: #{tpu_custom_call.1} parent=5 // pred_region
        %s241 = ssub.s32 %s10, 2
        // Predicated region
        $region33: #{tpu_custom_call.1} parent=31 // pred_check
          %p242 = pneg %p65
        $region34: #{tpu_custom_call.1} parent=31 // pred_check_branch
          %244 = sbr.rel (%p242) target = $region36
        $region35: #{tpu_custom_call.1} parent=31 // pred_region
          %s245 = sand.u32 %s50, 1
          %s246 = scalar_lea.sflag [#allocation3], %s245
          %s247 = sand.u32 %s50, 1
          %s248 = smul.addr %s247, 8
          %s249 = scalar_lea.vmem [#allocation2], %s248
          %250 = dma.done %s246, 128
        $region36: #{tpu_custom_call.1} parent=31 // pred_fallthru
          _
      $region32: #{tpu_custom_call.1} parent=5 // pred_fallthru
        _
    $region6: #{tpu_custom_call.1} parent=1 // loop_footer
      %s14 = sadd.s32 1, %s10
    $region7: #{tpu_custom_call.1} parent=1 // loop_footer_branch
      %9 = sbr.rel target = $region3
    $region8: #{tpu_custom_call.1} parent=1 // loop_exit
      _
    %251 = vsyncpa [#allocation3], 1
    %s252 = scalar_lea.sflag [#allocation3], 1
    %253 = vsyncpa %s252, 1

</llo_original>
